<compile_context>
chip_gen: v7x
topology: tpu7x:2x2x1
jax: 0.10.0
libtpu: 0.0.40
codegen_flags: <defaults>
</compile_context>

<pallas_src>
import jax
import jax.numpy as jnp
from jax.experimental import pallas as pl
from jax.experimental.pallas import tpu as pltpu


def _make_pinball_kernel(B, tb, n_half, compute_dtype):
    """Kernel with shape/tiling parameters baked in as Python scalars."""

    def kernel(q_ref, preds_ref, target_ref, out_ref, acc_ref):
        p = pl.program_id(0)   # parallel half (megacore axis)
        i = pl.program_id(1)   # sequential batch-tile index within the half

        @pl.when(i == 0)
        def _():
            acc_ref[...] = jnp.zeros_like(acc_ref)

        preds = preds_ref[...].astype(compute_dtype)     # (Q, tb) lane-dense in B
        target = target_ref[...].astype(compute_dtype)   # (1, tb) broadcasts over Q
        q_col = q_ref[...].astype(compute_dtype)         # (Q, 1)

        errors = target - preds                          # (Q, tb)
        # max((q-1)e, q e) == q*e - min(e, 0)   (saves one vector multiply)
        pin = q_col * errors - jnp.minimum(errors, 0.0)

        # Mask lanes past the true batch size: covers the ragged last tile and
        # the clamped, fully out-of-range duplicate tile of an odd tile count.
        start = (p * n_half + i) * tb
        lane = jax.lax.broadcasted_iota(jnp.int32, (1, tb), 1)
        mask = (lane + start) < B
        acc_ref[...] += jnp.where(mask, pin, 0.0).astype(jnp.float32)

        # Single cross-lane/cross-sublane reduce, once per half.
        @pl.when(i == n_half - 1)
        def _():
            out_ref[...] = jnp.sum(acc_ref[...]).reshape(1, 1, 1)

    return kernel


def _round_up(n, m):
    return ((n + m - 1) // m) * m


def _choose_batch_tile(B, Q, itemsize,
                       target_step_bytes=2 * 1024 * 1024,
                       vmem_budget_bytes=20 * 1024 * 1024):
    """Pick the lane tile so each grid step moves ~MBs of HBM data while the
    double-buffered VMEM footprint (incl. 8-sublane padding) stays bounded."""
    pad8 = _round_up(Q, 8)
    # Per-lane VMEM bytes: preds + target input buffers (each padded to 8
    # sublanes, double-buffered) plus the f32 accumulator scratch.
    per_lane_vmem = 2 * (pad8 + 8) * itemsize + pad8 * 4
    per_lane_hbm = (Q + 1) * itemsize
    tb = min(target_step_bytes // per_lane_hbm,
             vmem_budget_bytes // per_lane_vmem)
    tb = min(tb, _round_up(B, 128))        # never larger than the (rounded) batch
    tb = max(128, (tb // 128) * 128)       # multiple of 128 lanes
    return int(tb)


def pinball_loss_qb(preds_qb, target, quantiles, *,
                    target_step_bytes=2 * 1024 * 1024,
                    vmem_budget_bytes=20 * 1024 * 1024):
    """Pinball loss with preds already in the lane-dense (Q, B) layout.

    preds_qb: (Q, B) float array (f32 or bf16)
    target:   (B,)   float array
    quantiles: length-Q sequence of Python floats
    """
    Q, B = preds_qb.shape
    assert len(quantiles) == Q

    itemsize = jnp.dtype(preds_qb.dtype).itemsize
    # bf16 math on the VPU (v6e/v7x have bf16 VALU); accumulation stays f32.
    compute_dtype = jnp.bfloat16 if preds_qb.dtype == jnp.bfloat16 else jnp.float32

    tb = _choose_batch_tile(B, Q, itemsize, target_step_bytes, vmem_budget_bytes)
    n_tiles = pl.cdiv(B, tb)          # total batch tiles
    n_half = pl.cdiv(n_tiles, 2)      # tiles per parallel half
    last_block = n_tiles - 1

    def tile_map(p, i):
        # Clamp so an odd tile count never DMAs out of bounds; the fully
        # out-of-range duplicate tile is zeroed by the in-kernel mask.
        return (0, jnp.minimum(p * n_half + i, last_block))

    q_arr = jnp.asarray(quantiles, dtype=jnp.float32).reshape(Q, 1)
    target_row = target.reshape(1, B)

    partials = pl.pallas_call(
        _make_pinball_kernel(B, tb, n_half, compute_dtype),
        out_shape=jax.ShapeDtypeStruct((2, 1, 1), jnp.float32),
        grid_spec=pltpu.PrefetchScalarGridSpec(
            num_scalar_prefetch=0,
            grid=(2, n_half),
            in_specs=[
                pl.BlockSpec((Q, 1), lambda p, i: (0, 0)),   # quantiles (static)
                pl.BlockSpec((Q, tb), tile_map),             # preds tile
                pl.BlockSpec((1, tb), tile_map),             # target tile
            ],
            out_specs=pl.BlockSpec((1, 1, 1), lambda p, i: (p, 0, 0)),
            scratch_shapes=[pltpu.VMEM((Q, tb), jnp.float32)],  # partial sums
        ),
        compiler_params=pltpu.CompilerParams(
            dimension_semantics=("parallel", "arbitrary"),
            vmem_limit_bytes=32 * 1024 * 1024,   # safe on v5e/v6e/v7x
        ),
    )(q_arr, preds_qb, target_row)

    # Tiny final combine: two partial sums, one divide by the true count.
    return jnp.sum(partials) * (1.0 / (B * Q))


def pinball_loss(preds, target, quantiles, **kwargs):
    """PyTorch-layout entry point: preds (B, Q), target (B,).

    The transpose below is pure layout plumbing; if the producer can emit the
    (Q, B) layout directly, call `pinball_loss_qb` and skip the extra HBM
    round trip entirely.
    """
    return pinball_loss_qb(preds.T, target, quantiles, **kwargs)


def _pinball_ref(preds, target, quantiles):
    # Pure-JAX mirror of the PyTorch forward (per-quantile means, then mean).
    preds = preds.astype(jnp.float32)
    target = target.astype(jnp.float32)
    losses = []
    for i, q in enumerate(quantiles):
        e = target - preds[:, i]
        losses.append(jnp.mean(jnp.maximum((q - 1.0) * e, q * e)))
    return jnp.mean(jnp.stack(losses))


if __name__ == "__main__":
    key = jax.random.PRNGKey(0)
    k1, k2, k3, k4 = jax.random.split(key, 4)

    # Test 1: tiny batch (single tile; second parallel half fully masked).
    B, Q = 8, 4
    quantiles = (0.1, 0.25, 0.5, 0.9)
    preds = jax.random.normal(k1, (B, Q), dtype=jnp.float32)
    target = jax.random.normal(k2, (B,), dtype=jnp.float32)
    loss = jax.block_until_ready(pinball_loss(preds, target, quantiles))
    ref = jax.block_until_ready(_pinball_ref(preds, target, quantiles))
    assert jnp.allclose(loss, ref, atol=1e-5, rtol=1e-5), (loss, ref)

    # Test 2: ragged batch, multi-tile accumulation with both parallel halves
    # active (tiny per-step budget forces tb=128 -> 3 tiles -> grid (2, 2),
    # exercising the ragged mask and the clamped fully-masked duplicate tile).
    B2, Q2 = 300, 3
    quantiles2 = (0.05, 0.5, 0.95)
    preds2 = jax.random.normal(k3, (B2, Q2), dtype=jnp.float32)
    target2 = jax.random.normal(k4, (B2,), dtype=jnp.float32)
    loss2 = jax.block_until_ready(
        pinball_loss(preds2, target2, quantiles2,
                     target_step_bytes=128 * (Q2 + 1) * 4))
    ref2 = jax.block_until_ready(_pinball_ref(preds2, target2, quantiles2))
    assert jnp.allclose(loss2, ref2, atol=1e-5, rtol=1e-5), (loss2, ref2)

    print("KERNEL_OK")
</pallas_src>

<mosaic_0001>
module attributes {stable_mosaic.version = 11 : i64} {
  func.func @kernel(%arg0: i32, %arg1: i32, %arg2: memref<4x1xf32, #tpu.memory_space<vmem>>, %arg3: memref<4x128xf32, #tpu.memory_space<vmem>>, %arg4: memref<1x128xf32, #tpu.memory_space<vmem>>, %arg5: memref<1x1x1xf32, #tpu.memory_space<vmem>>, %arg6: memref<4x128xf32, #tpu.memory_space<vmem>>) attributes {dimension_semantics = [#tpu.dimension_semantics<parallel>, #tpu.dimension_semantics<arbitrary>], iteration_bounds = array<i64: 2, 1>, scalar_prefetch = 0 : i64, scratch_operands = 1 : i64, tpu.core_type = #tpu.core_type<tc>, window_params = [{pipeline_mode = #tpu.pipeline_mode<synchronous>, transform_indices = @transform_0, window_bounds = array<i64: 4, 1>}, {transform_indices = @transform_1, window_bounds = array<i64: 4, 128>}, {transform_indices = @transform_2, window_bounds = array<i64: 1, 128>}, {transform_indices = @transform_3, window_bounds = array<i64: 1, 1, 1>}]} {
    %c0_i32 = arith.constant 0 : i32
    %0 = arith.cmpi eq, %arg1, %c0_i32 : i32
    %1 = arith.extui %0 : i1 to i32
    %c0_i32_0 = arith.constant 0 : i32
    %2 = arith.cmpi ne, %1, %c0_i32_0 : i32
    scf.if %2 {
      %cst_13 = arith.constant 0.000000e+00 : f32
      %31 = vector.broadcast %cst_13 : f32 to vector<4x128xf32>
      %c0_14 = arith.constant 0 : index
      %c0_15 = arith.constant 0 : index
      %32 = vector.load %arg6[%c0_14, %c0_15] : memref<4x128xf32, #tpu.memory_space<vmem>>, vector<4x128xf32>
      tpu.vector_store %arg6[%c0_14, %c0_15], %31 {strides = array<i32>} : memref<4x128xf32, #tpu.memory_space<vmem>>, vector<4x128xf32>,
    } else {
    }
    %c0 = arith.constant 0 : index
    %c0_1 = arith.constant 0 : index
    %3 = vector.load %arg3[%c0, %c0_1] : memref<4x128xf32, #tpu.memory_space<vmem>>, vector<4x128xf32>
    %c0_2 = arith.constant 0 : index
    %c0_3 = arith.constant 0 : index
    %4 = vector.load %arg4[%c0_2, %c0_3] : memref<1x128xf32, #tpu.memory_space<vmem>>, vector<1x128xf32>
    %c0_4 = arith.constant 0 : index
    %c0_5 = arith.constant 0 : index
    %5 = vector.load %arg2[%c0_4, %c0_5] : memref<4x1xf32, #tpu.memory_space<vmem>>, vector<4x1xf32>
    %6 = vector.broadcast %4 : vector<1x128xf32> to vector<4x128xf32>
    %7 = arith.subf %6, %3 : vector<4x128xf32>
    %8 = vector.broadcast %5 : vector<4x1xf32> to vector<4x128xf32>
    %9 = arith.mulf %8, %7 : vector<4x128xf32>
    %cst = arith.constant 0.000000e+00 : f32
    %10 = vector.broadcast %cst : f32 to vector<4x128xf32>
    %11 = arith.minimumf %7, %10 : vector<4x128xf32>
    %12 = arith.subf %9, %11 : vector<4x128xf32>
    %c1_i32 = arith.constant 1 : i32
    %13 = arith.muli %arg0, %c1_i32 : i32
    %14 = arith.addi %13, %arg1 : i32
    %c128_i32 = arith.constant 128 : i32
    %15 = arith.muli %14, %c128_i32 : i32
    %16 = tpu.iota {dimensions = array<i32: 1>} : vector<1x128xi32>
    %17 = vector.broadcast %15 : i32 to vector<1x128xi32>
    %18 = arith.addi %16, %17 : vector<1x128xi32>
    %c8_i32 = arith.constant 8 : i32
    %19 = vector.broadcast %c8_i32 : i32 to vector<1x128xi32>
    %20 = arith.cmpi slt, %18, %19 : vector<1x128xi32>
    %c0_6 = arith.constant 0 : index
    %c0_7 = arith.constant 0 : index
    %21 = vector.load %arg6[%c0_6, %c0_7] : memref<4x128xf32, #tpu.memory_space<vmem>>, vector<4x128xf32>
    %cst_8 = arith.constant 0.000000e+00 : f32
    %22 = vector.shape_cast %20 : vector<1x128xi1> to vector<1x128xi1>
    %23 = vector.broadcast %22 : vector<1x128xi1> to vector<4x128xi1>
    %24 = vector.broadcast %cst_8 : f32 to vector<4x128xf32>
    %25 = arith.select %23, %12, %24 : vector<4x128xi1>, vector<4x128xf32>
    %26 = arith.addf %21, %25 : vector<4x128xf32>
    %c0_9 = arith.constant 0 : index
    %c0_10 = arith.constant 0 : index
    %27 = vector.load %arg6[%c0_9, %c0_10] : memref<4x128xf32, #tpu.memory_space<vmem>>, vector<4x128xf32>
    tpu.vector_store %arg6[%c0_9, %c0_10], %26 {strides = array<i32>} : memref<4x128xf32, #tpu.memory_space<vmem>>, vector<4x128xf32>,
    %c0_i32_11 = arith.constant 0 : i32
    %28 = arith.cmpi eq, %arg1, %c0_i32_11 : i32
    %29 = arith.extui %28 : i1 to i32
    %c0_i32_12 = arith.constant 0 : i32
    %30 = arith.cmpi ne, %29, %c0_i32_12 : i32
    scf.if %30 {
      %c0_13 = arith.constant 0 : index
      %c0_14 = arith.constant 0 : index
      %31 = vector.load %arg6[%c0_13, %c0_14] : memref<4x128xf32, #tpu.memory_space<vmem>>, vector<4x128xf32>
      %32 = vector.shape_cast %31 : vector<4x128xf32> to vector<1x4x128xf32>
      %cst_15 = arith.constant dense<0.000000e+00> : vector<1xf32>
      %33 = vector.multi_reduction <add>, %32, %cst_15 [1, 2] : vector<1x4x128xf32> to vector<1xf32>
      %34 = vector.shape_cast %33 : vector<1xf32> to vector<1x1x1xf32>
      %35 = vector.extract %34[0, 0, 0] : f32 from vector<1x1x1xf32>
      %36 = vector.broadcast %35 : f32 to vector<1x1x1xf32>
      %c0_16 = arith.constant 0 : index
      %c0_17 = arith.constant 0 : index
      %c0_18 = arith.constant 0 : index
      %37 = vector.load %arg5[%c0_16, %c0_17, %c0_18] : memref<1x1x1xf32, #tpu.memory_space<vmem>>, vector<1x1x1xf32>
      tpu.vector_store %arg5[%c0_16, %c0_17, %c0_18], %36 {strides = array<i32>} : memref<1x1x1xf32, #tpu.memory_space<vmem>>, vector<1x1x1xf32>,
    } else {
    }
    return
  }
  func.func @transform_0(%arg0: i32, %arg1: i32) -> (i32, i32) {
    %c0_i32 = arith.constant 0 : i32
    %c0_i32_0 = arith.constant 0 : i32
    %c0_i32_1 = arith.constant 0 : i32
    return %c0_i32, %c0_i32_0 : i32, i32
  }
  func.func @transform_1(%arg0: i32, %arg1: i32) -> (i32, i32) {
    %c1_i32 = arith.constant 1 : i32
    %0 = arith.muli %arg0, %c1_i32 : i32
    %1 = arith.addi %0, %arg1 : i32
    %c0_i32 = arith.constant 0 : i32
    %2 = arith.minsi %1, %c0_i32 : i32
    %c0_i32_0 = arith.constant 0 : i32
    %c0_i32_1 = arith.constant 0 : i32
    return %c0_i32_0, %2 : i32, i32
  }
  func.func @transform_2(%arg0: i32, %arg1: i32) -> (i32, i32) {
    %c1_i32 = arith.constant 1 : i32
    %0 = arith.muli %arg0, %c1_i32 : i32
    %1 = arith.addi %0, %arg1 : i32
    %c0_i32 = arith.constant 0 : i32
    %2 = arith.minsi %1, %c0_i32 : i32
    %c0_i32_0 = arith.constant 0 : i32
    %c0_i32_1 = arith.constant 0 : i32
    return %c0_i32_0, %2 : i32, i32
  }
  func.func @transform_3(%arg0: i32, %arg1: i32) -> (i32, i32, i32) {
    %c0_i32 = arith.constant 0 : i32
    %c0_i32_0 = arith.constant 0 : i32
    %c0_i32_1 = arith.constant 0 : i32
    return %arg0, %c0_i32, %c0_i32_0 : i32, i32, i32
  }
}

</mosaic_0001>

<llo_original>
// kernel: tpu_custom_call.1
$region0: #{tpu_custom_call.1}
  #allocation0 [shape = 'u32[]', space=smem, size = 0x4, offset = 0x4, fixed_abs, tag = 'smem constant byte address 0x4 - core index']
  #allocation1 [shape = 'u32[144,128]{1,0:T(1,128)}', space=vmem, size = 0x12000, scoped, tag = 'internal scratch']
  #allocation2 [shape = 'f32[4,128]{1,0:T(4,128)}', space=vmem, size = 0x800, scoped, tag = 'scratch operand']
  %s0 = inlined_call_operand.vmem [shape: f32[4,1], index: 0, kind: input, shape index: {}]
  %s1 = inlined_call_operand.vmem [shape: f32[4,8], index: 1, kind: input, shape index: {}]
  %s2 = inlined_call_operand.vmem [shape: f32[1,8], index: 2, kind: input, shape index: {}]
  %s3 = inlined_call_operand.vmem [shape: f32[2,1,1], index: 3, kind: output, shape index: {}]
  %s4 = sld [smem:[#allocation0]]
  $region53: #{tpu_custom_call.1} parent=0
    _
  %s6 = ssub.s32 1, %s4
  %s7 = scalar_select 0, %s6, %s4
  loop: start=0, step=1, limit=4
  $region2: #{tpu_custom_call.1} parent=0 // loop_pre_header
    _
  $region3: #{tpu_custom_call.1} parent=0 // loop_header
    %s9 = sphi 0, %s13
    %p10 = scmp.ge.s32.totalorder %s9, 4
    %s16 = sphi 0, %s28
    %s17 = sphi 0, %s24
    %s18 = sphi 0, %s16
    %s19 = sphi 0, %s17
    %s20 = sphi 0, %s18
    %s21 = sphi 0, %s19
    %s29 = sphi 0, %s29
    %s31 = sphi 0, %s29
    %s32 = sphi 0, %s31
    %s46 = sphi 0, %s32
    %s58 = sphi 0, %s60
    %s61 = sphi 0, %s58
    %s62 = sphi 0, %s61
    %s78 = sphi 0, %s62
    %s90 = sphi 0, %s92
    %s93 = sphi 0, %s90
    %s94 = sphi 0, %s93
    %s110 = sphi 0, %s94
    %s116 = sphi 0, %s118
    %s119 = sphi 0, %s116
    %s120 = sphi 0, %s119
    %s136 = sphi 0, %s120
  $region4: #{tpu_custom_call.1} parent=0 // loop_header_branch
    %12 = sbr.rel (%p10) target = $region8
  $region5: #{tpu_custom_call.1} parent=0 // loop_body
    %s14 = ssub.s32 %s9, 1
    %s15 = ssub.s32 %s9, 2
    %s22 = sadd.s32 1, %s17
    %p23 = scmp.ge.s32.totalorder %s22, 1
    %s24 = scalar_select %p23, 0, %s22
    %s25 = sadd.s32 1, %s16
    %s26 = scalar_select %p23, %s25, %s16
    %p27 = scmp.ge.s32.totalorder %s26, 2
    %s28 = scalar_select %p27, 0, %s26
    %s30 = sadd.s32 %s29, 1
    %p33 = scmp.eq.s32.totalorder %s9, 1
    %p34 = scmp.ne.s32.totalorder %s29, %s31
    %p35 = scmp.eq.s32.totalorder %s9, 0
    %p36 = por %p34, %p35
    %p37 = scmp.ne.s32.totalorder %s29, %s31
    %p38 = scmp.eq.s32.totalorder %s14, 1
    %p39 = por %p37, %p38
    %p40 = scmp.ne.s32.totalorder %s31, %s32
    %p41 = scmp.eq.s32.totalorder %s14, 0
    %p42 = por %p40, %p41
    %p43 = scmp.ne.s32.totalorder %s31, %s32
    %p44 = scmp.eq.s32.totalorder %s15, 1
    %p45 = por %p43, %p44
    %p47 = scmp.ne.s32.totalorder %s32, %s46
    %p48 = scmp.eq.s32.totalorder %s15, 0
    %p49 = por %p47, %p48
    %s50 = sadd.s32 %s16, %s17
    %p51 = scmp.lt.s32.totalorder %s50, 0
    %s52 = scalar_select %p51, %s50, 0
    %s53 = sadd.s32 %s28, %s24
    %p54 = scmp.lt.s32.totalorder %s53, 0
    %s55 = scalar_select %p54, %s53, 0
    %s56 = ssub.s32 %s52, %s55
    %p57 = scmp.eq.s32.totalorder %s56, 0
    %s59 = sadd.s32 %s58, 1
    %s60 = scalar_select %p57, %s58, %s59
    %p63 = pneg %p57
    %p64 = scmp.eq.s32.totalorder %s9, 1
    %p65 = por %p63, %p64
    %p66 = scmp.ne.s32.totalorder %s58, %s61
    %p67 = scmp.eq.s32.totalorder %s9, 0
    %p68 = por %p66, %p67
    %p69 = scmp.ne.s32.totalorder %s58, %s61
    %p70 = scmp.eq.s32.totalorder %s14, 1
    %p71 = por %p69, %p70
    %p72 = scmp.ne.s32.totalorder %s61, %s62
    %p73 = scmp.eq.s32.totalorder %s14, 0
    %p74 = por %p72, %p73
    %p75 = scmp.ne.s32.totalorder %s61, %s62
    %p76 = scmp.eq.s32.totalorder %s15, 1
    %p77 = por %p75, %p76
    %p79 = scmp.ne.s32.totalorder %s62, %s78
    %p80 = scmp.eq.s32.totalorder %s15, 0
    %p81 = por %p79, %p80
    %s82 = sadd.s32 %s16, %s17
    %p83 = scmp.lt.s32.totalorder %s82, 0
    %s84 = scalar_select %p83, %s82, 0
    %s85 = sadd.s32 %s28, %s24
    %p86 = scmp.lt.s32.totalorder %s85, 0
    %s87 = scalar_select %p86, %s85, 0
    %s88 = ssub.s32 %s84, %s87
    %p89 = scmp.eq.s32.totalorder %s88, 0
    %s91 = sadd.s32 %s90, 1
    %s92 = scalar_select %p89, %s90, %s91
    %p95 = pneg %p89
    %p96 = scmp.eq.s32.totalorder %s9, 1
    %p97 = por %p95, %p96
    %p98 = scmp.ne.s32.totalorder %s90, %s93
    %p99 = scmp.eq.s32.totalorder %s9, 0
    %p100 = por %p98, %p99
    %p101 = scmp.ne.s32.totalorder %s90, %s93
    %p102 = scmp.eq.s32.totalorder %s14, 1
    %p103 = por %p101, %p102
    %p104 = scmp.ne.s32.totalorder %s93, %s94
    %p105 = scmp.eq.s32.totalorder %s14, 0
    %p106 = por %p104, %p105
    %p107 = scmp.ne.s32.totalorder %s93, %s94
    %p108 = scmp.eq.s32.totalorder %s15, 1
    %p109 = por %p107, %p108
    %p111 = scmp.ne.s32.totalorder %s94, %s110
    %p112 = scmp.eq.s32.totalorder %s15, 0
    %p113 = por %p111, %p112
    %s114 = ssub.s32 %s16, %s28
    %p115 = scmp.eq.s32.totalorder %s114, 0
    %s117 = sadd.s32 %s116, 1
    %s118 = scalar_select %p115, %s116, %s117
    %p121 = pneg %p115
    %p122 = scmp.eq.s32.totalorder %s9, 1
    %p123 = por %p121, %p122
    %p124 = scmp.ne.s32.totalorder %s116, %s119
    %p125 = scmp.eq.s32.totalorder %s9, 0
    %p126 = por %p124, %p125
    %p127 = scmp.ne.s32.totalorder %s116, %s119
    %p128 = scmp.eq.s32.totalorder %s14, 1
    %p129 = por %p127, %p128
    %p130 = scmp.ne.s32.totalorder %s119, %s120
    %p131 = scmp.eq.s32.totalorder %s14, 0
    %p132 = por %p130, %p131
    %p133 = scmp.ne.s32.totalorder %s119, %s120
    %p134 = scmp.eq.s32.totalorder %s15, 1
    %p135 = por %p133, %p134
    %p137 = scmp.ne.s32.totalorder %s120, %s136
    %p138 = scmp.eq.s32.totalorder %s15, 0
    %p139 = por %p137, %p138
    %p140 = scmp.le.s32.totalorder 1, %s9
    %p141 = scmp.lt.s32.totalorder %s9, 3
    %p142 = pnand %p140, %p141
    %p143 = pneg %p142
    // Predicated region
    $region9: #{tpu_custom_call.1} parent=5 // pred_check
      _
    $region10: #{tpu_custom_call.1} parent=5 // pred_check_branch
      %145 = sbr.rel (%p142) target = $region12
    $region11: #{tpu_custom_call.1} parent=5 // pred_region
      %s146 = ssub.s32 %s9, 1
      // Predicated region
      $region13: #{tpu_custom_call.1} parent=11 // pred_check
        %p147 = pneg %p42
      $region14: #{tpu_custom_call.1} parent=11 // pred_check_branch
        %149 = sbr.rel (%p147) target = $region16
      $region15: #{tpu_custom_call.1} parent=11 // pred_region
        _
      $region16: #{tpu_custom_call.1} parent=11 // pred_fallthru
        _
    $region12: #{tpu_custom_call.1} parent=5 // pred_fallthru
      _
    %p150 = scmp.lt.s32.totalorder %s9, 2
    // Predicated region
    $region17: #{tpu_custom_call.1} parent=5 // pred_check
      %p151 = pneg %p150
    $region18: #{tpu_custom_call.1} parent=5 // pred_check_branch
      %153 = sbr.rel (%p151) target = $region20
    $region19: #{tpu_custom_call.1} parent=5 // pred_region
      // Predicated region
      $region21: #{tpu_custom_call.1} parent=19 // pred_check
        %p154 = pneg %p68
      $region22: #{tpu_custom_call.1} parent=19 // pred_check_branch
        %156 = sbr.rel (%p154) target = $region24
      $region23: #{tpu_custom_call.1} parent=19 // pred_region
        %s157 = sadd.s32 %s16, %s17
        %p158 = scmp.lt.s32.totalorder %s157, 0
        %s159 = scalar_select %p158, %s157, 0
        %p160 = scmp.lt.s32.totalorder %s159, 0
        %s161 = scalar_select %p160, %s159, 0
        %s162 = smul.addr %s161, 4
        %s163 = scalar_lea.vmem %s1, %s162
        %s164 = sadd.s32 %s16, %s17
        %p165 = scmp.lt.s32.totalorder %s164, 0
        %s166 = scalar_select %p165, %s164, 0
      $region24: #{tpu_custom_call.1} parent=19 // pred_fallthru
        _
      // Predicated region
      $region25: #{tpu_custom_call.1} parent=19 // pred_check
        %p167 = pneg %p100
      $region26: #{tpu_custom_call.1} parent=19 // pred_check_branch
        %169 = sbr.rel (%p167) target = $region28
      $region27: #{tpu_custom_call.1} parent=19 // pred_region
        %s170 = sadd.s32 %s16, %s17
        %p171 = scmp.lt.s32.totalorder %s170, 0
        %s172 = scalar_select %p171, %s170, 0
        %p173 = scmp.lt.s32.totalorder %s172, 0
        %s174 = scalar_select %p173, %s172, 0
        %s175 = scalar_lea.vmem %s2, %s174
        %s176 = sadd.s32 %s16, %s17
        %p177 = scmp.lt.s32.totalorder %s176, 0
        %s178 = scalar_select %p177, %s176, 0
      $region28: #{tpu_custom_call.1} parent=19 // pred_fallthru
        _
    $region20: #{tpu_custom_call.1} parent=5 // pred_fallthru
      _
    %p179 = scmp.le.s32.totalorder 1, %s9
    %p180 = scmp.lt.s32.totalorder %s9, 3
    %p181 = pnand %p179, %p180
    %p182 = pneg %p181
    // Predicated region
    $region29: #{tpu_custom_call.1} parent=5 // pred_check
      _
    $region30: #{tpu_custom_call.1} parent=5 // pred_check_branch
      %184 = sbr.rel (%p181) target = $region32
    $region31: #{tpu_custom_call.1} parent=5 // pred_region
      %s185 = ssub.s32 %s9, 1
      %p186 = pneg %p42
      %p187 = pneg %p39
      %s188 = sadd.s32 %s18, %s19
      %p189 = scmp.lt.s32.totalorder %s188, 0
      %s190 = scalar_select %p189, %s188, 0
      %p191 = scmp.lt.s32.totalorder %s190, 0
      %s192 = scalar_select %p191, %s190, 0
      %s193 = smul.addr %s192, 4
      %s194 = scalar_lea.vmem %s1, %s193
      %p195 = pneg %p74
      %p196 = pneg %p71
      %s197 = sadd.s32 %s18, %s19
      %p198 = scmp.lt.s32.totalorder %s197, 0
      %s199 = scalar_select %p198, %s197, 0
      %p200 = scmp.lt.s32.totalorder %s199, 0
      %s201 = scalar_select %p200, %s199, 0
      %s202 = scalar_lea.vmem %s2, %s201
      %p203 = pneg %p106
      %p204 = pneg %p103
      %p205 = pneg %p132
      %p206 = pneg %p129
      %p207 = scmp.lt.s32.totalorder %s18, 1
      %s208 = scalar_select %p207, %s18, 1
      %s209 = scalar_lea.vmem %s3, %s208
      %s210 = sadd.s32 %s18, %s19
      %p211 = scmp.lt.s32.totalorder %s210, 0
      %s212 = scalar_select %p211, %s210, 0
      %p213 = scmp.lt.s32.totalorder %s212, 0
      %s214 = scalar_select %p213, %s212, 0
      %s215 = smul.addr %s214, 4
      %s216 = scalar_lea.vmem %s1, %s215
      %s217 = sadd.s32 %s18, %s19
      %p218 = scmp.lt.s32.totalorder %s217, 0
      %s219 = scalar_select %p218, %s217, 0
      %s220 = sadd.s32 %s18, %s19
      %p221 = scmp.lt.s32.totalorder %s220, 0
      %s222 = scalar_select %p221, %s220, 0
      %p223 = scmp.lt.s32.totalorder %s222, 0
      %s224 = scalar_select %p223, %s222, 0
      %s225 = scalar_lea.vmem %s2, %s224
      %s226 = sadd.s32 %s18, %s19
      %p227 = scmp.lt.s32.totalorder %s226, 0
      %s228 = scalar_select %p227, %s226, 0
      %p229 = scmp.lt.s32.totalorder %s18, 1
      %s230 = scalar_select %p229, %s18, 1
      %s231 = scalar_lea.vmem %s3, %s230
      %p232 = scmp.eq.s32.totalorder %s19, 0
      // Predicated region
      $region33: #{tpu_custom_call.1} parent=31 // pred_check
        %p233 = pneg %p232
      $region34: #{tpu_custom_call.1} parent=31 // pred_check_branch
        %235 = sbr.rel (%p233) target = $region36
      $region35: #{tpu_custom_call.1} parent=31 // pred_region
        %236 = vst [vmem:[#allocation2] sm:$0xf] 0.0
      $region36: #{tpu_custom_call.1} parent=31 // pred_fallthru
        _
      %v237 = vld [vmem:[%s216] sm:$0xf]
      %v238 = vld [vmem:[%s225] sm:$0x1]
      %v239 = vld [vmem:[%s0] sm:$0xf]
      %v241 = vlaneseq
      %v242 = vshrl.u32 %v241, 7
      %v243 = vsub.s32 0, %v242
      %v244 = vrot.slane %v238, %v243
      %v246 = vsub.f32 %v244, %v237
      %248 = vset.pattern.permute.xlu0 0
      %249 = vperm.xlu0 %248, %v239
      %v250 = vpop.permute.xlu0 %249
      %v252 = vmul.f32 %v250, %v246
      %v253 = vmin.f32 %v246, 0.0
      %v254 = vsub.f32 %v252, %v253
      %s255 = sadd.s32 %s18, %s19
      %s256 = smul.u32 %s255, 128
      %v257 = vlaneseq
      %v258 = vand.u32 %v257, 127
      %v259 = vstv %s256
      %v260 = vadd.s32 %v258, %v259
      %vm261 = vcmp.lt.s32.totalorder %v260, 8
      %v262 = vld [vmem:[#allocation2] sm:$0xf]
      %v263 = vsel %vm261, 1, 0
      %vm264 = vcmp.eq.s32.totalorder %v263, 1
      %v265 = vsel %vm264, %v254, 0.0
      %v266 = vadd.f32 %v262, %v265
      %267 = vst [vmem:[#allocation2] sm:$0xf] %v266
      // Predicated region
      $region37: #{tpu_custom_call.1} parent=31 // pred_check
        %p268 = pneg %p232
      $region38: #{tpu_custom_call.1} parent=31 // pred_check_branch
        %270 = sbr.rel (%p268) target = $region40
      $region39: #{tpu_custom_call.1} parent=31 // pred_region
        %v271 = vld [vmem:[#allocation2] sm:$0xf]
        %vm272 = vcmask 1043456
        %v273 = vsel %vm272, %v271, 0.0
        %274 = vadd.xlane.f32.xlu0 %v273
        %v275 = vpop.xlane.xlu0 %274
        %v276 = vrot.slane %v275, 4
        %v277 = vadd.f32 %v275, %v276
        %v278 = vrot.slane %v277, 2
        %v279 = vadd.f32 %v277, %v278
        %v280 = vrot.slane %v279, 1
        %v281 = vadd.f32 %v279, %v280
        %s282 = vtos %v281
        %v283 = vstv %s282
        %vm284 = vcmask 0
        %285 = vst.msk [vmem:[%s231] sm:$0x1] %vm284, %v283
      $region40: #{tpu_custom_call.1} parent=31 // pred_fallthru
        _
      %p286 = scmp.lt.s32.totalorder %s18, 1
      %s287 = scalar_select %p286, %s18, 1
      %s288 = scalar_lea.vmem %s3, %s287
      // Predicated region
      $region41: #{tpu_custom_call.1} parent=31 // pred_check
        %p289 = pneg %p129
      $region42: #{tpu_custom_call.1} parent=31 // pred_check_branch
        %291 = sbr.rel (%p289) target = $region44
      $region43: #{tpu_custom_call.1} parent=31 // pred_region
        _
      $region44: #{tpu_custom_call.1} parent=31 // pred_fallthru
        _
    $region32: #{tpu_custom_call.1} parent=5 // pred_fallthru
      _
    %p292 = scmp.le.s32.totalorder 2, %s9
    // Predicated region
    $region45: #{tpu_custom_call.1} parent=5 // pred_check
      %p293 = pneg %p292
    $region46: #{tpu_custom_call.1} parent=5 // pred_check_branch
      %295 = sbr.rel (%p293) target = $region48
    $region47: #{tpu_custom_call.1} parent=5 // pred_region
      %s296 = ssub.s32 %s9, 2
      // Predicated region
      $region49: #{tpu_custom_call.1} parent=47 // pred_check
        %p297 = pneg %p135
      $region50: #{tpu_custom_call.1} parent=47 // pred_check_branch
        %299 = sbr.rel (%p297) target = $region52
      $region51: #{tpu_custom_call.1} parent=47 // pred_region
        %p300 = scmp.lt.s32.totalorder %s20, 1
        %s301 = scalar_select %p300, %s20, 1
        %s302 = scalar_lea.vmem %s3, %s301
      $region52: #{tpu_custom_call.1} parent=47 // pred_fallthru
        _
    $region48: #{tpu_custom_call.1} parent=5 // pred_fallthru
      _
  $region6: #{tpu_custom_call.1} parent=0 // loop_footer
    %s13 = sadd.s32 1, %s9
  $region7: #{tpu_custom_call.1} parent=0 // loop_footer_branch
    %8 = sbr.rel target = $region3
  $region8: #{tpu_custom_call.1} parent=0 // loop_exit
    _

</llo_original>
